<compile_context>
chip_gen: v7x
topology: tpu7x:2x2x1
jax: 0.10.0
libtpu: 0.0.40
codegen_flags: <defaults>
</compile_context>

<pallas_src>
import jax
import jax.numpy as jnp
from jax.experimental import pallas as pl
from jax.experimental.pallas import tpu as pltpu

EPS = 1e-5

_DEFAULT_VMEM_CAPACITY = 64 * 1024 * 1024  # conservative (v7x per-TC) fallback
_MIN_PIPELINE_DEPTH = 4                    # >= 4 grid steps for DMA overlap


def _vmem_capacity_bytes() -> int:
    """Physical VMEM capacity for the current chip (safe fallback: 64 MiB)."""
    try:
        info = pltpu.get_tpu_info()
        cap = getattr(info, "vmem_capacity_bytes", None)
        if cap is None or int(cap) <= 0:
            return _DEFAULT_VMEM_CAPACITY
        return int(cap)
    except Exception:
        return _DEFAULT_VMEM_CAPACITY


def _vmem_budgets() -> tuple[int, int]:
    """(pipeline-buffer budget, vmem_limit_bytes) scaled to chip VMEM.

    128 MiB chips (v5e/v6e) -> ~48 MiB buffers / 96 MiB limit.
    64 MiB chips (v7x)      -> ~24 MiB buffers / 48 MiB limit.
    """
    cap = _vmem_capacity_bytes()
    return (cap * 3) // 8, (cap * 3) // 4


def _sublane_multiple(itemsize: int) -> int:
    """Rows per packed vreg sublane group: 8 for f32, 16 for bf16, 32 for i8."""
    return max(8, 32 // max(itemsize, 1))


def _pick_tile_b(B: int, dim: int, itemsize: int) -> int:
    """Largest sublane-aligned batch tile that fits the pipeline-buffer budget
    while keeping at least _MIN_PIPELINE_DEPTH grid steps (when B allows)."""
    sub = _sublane_multiple(itemsize)
    budget, _ = _vmem_budgets()
    per_row = 4 * dim * itemsize              # 2 input bufs + 2 output bufs
    max_rows_budget = max(sub, budget // max(per_row, 1))

    tb = min(B, max_rows_budget)
    if B >= _MIN_PIPELINE_DEPTH * sub:
        # Guarantee >= ~4 grid steps so prefetch/writeback actually overlap
        # (and both TensorCores get work on megacore parts).
        tb = min(tb, -(-B // _MIN_PIPELINE_DEPTH))
    if tb < B:
        tb = max(sub, (tb // sub) * sub)      # sublane-aligned unless full-array
    return int(tb)


def _scaling_kernel(x_ref, scale_ref, y_ref):
    # Pure vld / vmul / vst: (TB, dim) tile times resident (1, dim) scale row.
    y_ref[...] = (x_ref[...] * scale_ref[...]).astype(y_ref.dtype)


def scaling_forward(x, scale_param, reverse=False, tile_b=None):
    """Apply the Scaling layer.

    Args:
        x: (B, dim) input.
        scale_param: (1, dim) log-scale parameter.
        reverse: static bool, inference (True) vs sampling (False) mode.
        tile_b: optional batch-tile override (rounded to a legal value).

    Returns:
        (y, log_det_J) with y of shape (B, dim) and log_det_J a scalar.
    """
    B, dim = x.shape
    assert scale_param.shape == (1, dim)

    # log|det J| = sum of raw log-scale params (matches the PyTorch reference
    # in both modes).  Tiny (1, dim) reduction -> plain JAX.
    log_det_J = jnp.sum(scale_param)

    # Hoisted effective scale: tiny (1, dim) XLA op, keeps the kernel's hot
    # loop free of EUP/Newton work and avoids one compiled variant per mode.
    eff_scale = jnp.exp(scale_param) + EPS
    if reverse:
        eff_scale = 1.0 / eff_scale
    eff_scale = eff_scale.astype(x.dtype)

    itemsize = jnp.dtype(x.dtype).itemsize
    sub = _sublane_multiple(itemsize)
    _, vmem_limit = _vmem_budgets()

    if tile_b is None:
        tile_b = _pick_tile_b(B, dim, itemsize)
    else:
        tile_b = int(tile_b)
        if tile_b >= B:
            tile_b = B                        # full extent is always legal
        else:
            tile_b = max(sub, (tile_b // sub) * sub)  # enforce (8,128)-rule

    # No padding / slicing: ragged last block is masked by Pallas.
    num_tiles = pl.cdiv(B, tile_b)

    y = pl.pallas_call(
        _scaling_kernel,
        out_shape=jax.ShapeDtypeStruct((B, dim), x.dtype),
        grid_spec=pltpu.PrefetchScalarGridSpec(
            num_scalar_prefetch=0,
            grid=(num_tiles,),
            in_specs=[
                pl.BlockSpec((tile_b, dim), lambda i: (i, 0)),  # streamed x tile
                pl.BlockSpec((1, dim), lambda i: (0, 0)),       # resident scale row
            ],
            out_specs=pl.BlockSpec((tile_b, dim), lambda i: (i, 0)),
        ),
        compiler_params=pltpu.CompilerParams(
            dimension_semantics=("parallel",),  # independent tiles -> both TCs
            vmem_limit_bytes=int(vmem_limit),
        ),
    )(x, eff_scale)

    return y, log_det_J


def scaling_reference(x, scale_param, reverse=False):
    """Pure-JAX reference mirroring the PyTorch forward."""
    sc = jnp.exp(scale_param) + EPS
    log_det = jnp.sum(scale_param)
    if reverse:
        sc = 1.0 / sc
    return x * sc, log_det


if __name__ == "__main__":
    key = jax.random.PRNGKey(0)
    kx, ks, kx2 = jax.random.split(key, 3)

    ok = True

    # Case 1: tile-aligned small shapes (main demo).
    B, dim = 128, 256
    x = jax.random.normal(kx, (B, dim), dtype=jnp.float32)
    scale_param = 0.1 * jax.random.normal(ks, (1, dim), dtype=jnp.float32)

    # Case 2: ragged batch (not a multiple of the tile) — exercises the
    # mask-the-last-block path with no pad / slice.
    B2 = 57
    x2 = jax.random.normal(kx2, (B2, dim), dtype=jnp.float32)

    for reverse in (False, True):
        for xin, tb in ((x, None), (x, 32), (x2, None)):
            y, logdet = scaling_forward(xin, scale_param, reverse=reverse, tile_b=tb)
            y = jax.block_until_ready(y)
            logdet = jax.block_until_ready(logdet)

            y_ref, logdet_ref = scaling_reference(xin, scale_param, reverse=reverse)
            ok &= bool(jnp.allclose(y, y_ref, atol=1e-5, rtol=1e-5))
            ok &= bool(jnp.allclose(logdet, logdet_ref, atol=1e-5, rtol=1e-5))

    if ok:
        print("KERNEL_OK")
    else:
        print("KERNEL_MISMATCH")
</pallas_src>

<mosaic_0001>
module attributes {stable_mosaic.version = 11 : i64} {
  func.func @_scaling_kernel(%arg0: i32, %arg1: memref<32x256xf32, #tpu.memory_space<vmem>>, %arg2: memref<1x256xf32, #tpu.memory_space<vmem>>, %arg3: memref<32x256xf32, #tpu.memory_space<vmem>>) attributes {dimension_semantics = [#tpu.dimension_semantics<parallel>], iteration_bounds = array<i64: 4>, scalar_prefetch = 0 : i64, scratch_operands = 0 : i64, tpu.core_type = #tpu.core_type<tc>, window_params = [{transform_indices = @transform_0, window_bounds = array<i64: 32, 256>}, {pipeline_mode = #tpu.pipeline_mode<synchronous>, transform_indices = @transform_1, window_bounds = array<i64: 1, 256>}, {transform_indices = @transform_2, window_bounds = array<i64: 32, 256>}]} {
    %c0 = arith.constant 0 : index
    %c0_0 = arith.constant 0 : index
    %0 = vector.load %arg1[%c0, %c0_0] : memref<32x256xf32, #tpu.memory_space<vmem>>, vector<32x256xf32>
    %c0_1 = arith.constant 0 : index
    %c0_2 = arith.constant 0 : index
    %1 = vector.load %arg2[%c0_1, %c0_2] : memref<1x256xf32, #tpu.memory_space<vmem>>, vector<1x256xf32>
    %2 = vector.broadcast %1 : vector<1x256xf32> to vector<32x256xf32>
    %3 = arith.mulf %0, %2 : vector<32x256xf32>
    %c0_3 = arith.constant 0 : index
    %c0_4 = arith.constant 0 : index
    %4 = vector.load %arg3[%c0_3, %c0_4] : memref<32x256xf32, #tpu.memory_space<vmem>>, vector<32x256xf32>
    tpu.vector_store %arg3[%c0_3, %c0_4], %3 {strides = array<i32>} : memref<32x256xf32, #tpu.memory_space<vmem>>, vector<32x256xf32>,
    return
  }
  func.func @transform_0(%arg0: i32) -> (i32, i32) {
    %c0_i32 = arith.constant 0 : i32
    %c0_i32_0 = arith.constant 0 : i32
    return %arg0, %c0_i32 : i32, i32
  }
  func.func @transform_1(%arg0: i32) -> (i32, i32) {
    %c0_i32 = arith.constant 0 : i32
    %c0_i32_0 = arith.constant 0 : i32
    %c0_i32_1 = arith.constant 0 : i32
    return %c0_i32, %c0_i32_0 : i32, i32
  }
  func.func @transform_2(%arg0: i32) -> (i32, i32) {
    %c0_i32 = arith.constant 0 : i32
    %c0_i32_0 = arith.constant 0 : i32
    return %arg0, %c0_i32 : i32, i32
  }
}

</mosaic_0001>

<llo_original>
// kernel: tpu_custom_call.1
$region0: #{tpu_custom_call.1}
  #allocation0 [shape = 'u32[]', space=smem, size = 0x4, offset = 0x4, fixed_abs, tag = 'smem constant byte address 0x4 - core index']
  #allocation1 [shape = 'u32[144,128]{1,0:T(1,128)}', space=vmem, size = 0x12000, scoped, tag = 'internal scratch']
  %s0 = inlined_call_operand.hbm [shape: f32[128,256], index: 0, kind: input, shape index: {}]
  %s1 = inlined_call_operand.vmem [shape: f32[1,256], index: 1, kind: input, shape index: {}]
  %s2 = inlined_call_operand.hbm [shape: f32[128,256], index: 2, kind: output, shape index: {}]
  %s3 = sld [smem:[#allocation0]]
  $region45: #{tpu_custom_call.1} parent=0
    _
  %s5 = ssub.s32 1, %s3
  %s6 = scalar_select 0, %s5, %s3
  $region1: #{tpu_custom_call.1} parent=0
    #allocation2 [shape = 'u8[65536]{0}', space=vmem, size = 0x10000, scoped, tag = 'input window, operand 0']
    #allocation3 [shape = 's32[2]{0}', space=sflag, size = 0x8, scoped, tag = 'scoped memory for tpu_custom_call.1']
    #allocation4 [shape = 's32[2]{0}', space=sflag, size = 0x8, scoped, tag = 'scoped memory for tpu_custom_call.1']
    #allocation5 [shape = 'u8[65536]{0}', space=vmem, size = 0x10000, scoped, tag = 'output window, operand 0']
    %7 = vsyncpa [#allocation3], 0
    %s8 = scalar_lea.sflag [#allocation3], 1
    %9 = vsyncpa %s8, 0
    %10 = vsyncpa [#allocation4], 0
    %s11 = scalar_lea.sflag [#allocation4], 1
    %12 = vsyncpa %s11, 0
    loop: start=0, step=1, limit=6
    $region2: #{tpu_custom_call.1} parent=1 // loop_pre_header
      _
    $region3: #{tpu_custom_call.1} parent=1 // loop_header
      %s14 = sphi 0, %s18
      %p15 = scmp.ge.s32.totalorder %s14, 6
      %s24 = sphi 0, %s26
      %s27 = sphi 0, %s24
      %s28 = sphi 0, %s27
      %s44 = sphi 0, %s28
      %s48 = sphi 0, %s48
      %s50 = sphi 0, %s48
      %s51 = sphi 0, %s50
      %s65 = sphi 0, %s51
      %s71 = sphi 0, %s73
      %s74 = sphi 0, %s71
      %s75 = sphi 0, %s74
      %s91 = sphi 0, %s75
    $region4: #{tpu_custom_call.1} parent=1 // loop_header_branch
      %17 = sbr.rel (%p15) target = $region8
    $region5: #{tpu_custom_call.1} parent=1 // loop_body
      %s19 = ssub.s32 %s14, 1
      %s20 = ssub.s32 %s14, 2
      %s21 = sadd.s32 %s14, 1
      %s22 = ssub.s32 %s14, %s21
      %p23 = scmp.eq.s32.totalorder %s22, 0
      %s25 = sadd.s32 %s24, 1
      %s26 = scalar_select %p23, %s24, %s25
      %p29 = pneg %p23
      %p30 = scmp.eq.s32.totalorder %s14, 3
      %p31 = por %p29, %p30
      %p32 = scmp.ne.s32.totalorder %s24, %s27
      %p33 = scmp.eq.s32.totalorder %s14, 0
      %p34 = por %p32, %p33
      %p35 = scmp.ne.s32.totalorder %s24, %s27
      %p36 = scmp.eq.s32.totalorder %s19, 3
      %p37 = por %p35, %p36
      %p38 = scmp.ne.s32.totalorder %s27, %s28
      %p39 = scmp.eq.s32.totalorder %s19, 0
      %p40 = por %p38, %p39
      %p41 = scmp.ne.s32.totalorder %s27, %s28
      %p42 = scmp.eq.s32.totalorder %s20, 3
      %p43 = por %p41, %p42
      %p45 = scmp.ne.s32.totalorder %s28, %s44
      %p46 = scmp.eq.s32.totalorder %s20, 0
      %p47 = por %p45, %p46
      %s49 = sadd.s32 %s48, 1
      %p52 = scmp.eq.s32.totalorder %s14, 3
      %p53 = scmp.ne.s32.totalorder %s48, %s50
      %p54 = scmp.eq.s32.totalorder %s14, 0
      %p55 = por %p53, %p54
      %p56 = scmp.ne.s32.totalorder %s48, %s50
      %p57 = scmp.eq.s32.totalorder %s19, 3
      %p58 = por %p56, %p57
      %p59 = scmp.ne.s32.totalorder %s50, %s51
      %p60 = scmp.eq.s32.totalorder %s19, 0
      %p61 = por %p59, %p60
      %p62 = scmp.ne.s32.totalorder %s50, %s51
      %p63 = scmp.eq.s32.totalorder %s20, 3
      %p64 = por %p62, %p63
      %p66 = scmp.ne.s32.totalorder %s51, %s65
      %p67 = scmp.eq.s32.totalorder %s20, 0
      %p68 = por %p66, %p67
      %s69 = ssub.s32 %s14, %s21
      %p70 = scmp.eq.s32.totalorder %s69, 0
      %s72 = sadd.s32 %s71, 1
      %s73 = scalar_select %p70, %s71, %s72
      %p76 = pneg %p70
      %p77 = scmp.eq.s32.totalorder %s14, 3
      %p78 = por %p76, %p77
      %p79 = scmp.ne.s32.totalorder %s71, %s74
      %p80 = scmp.eq.s32.totalorder %s14, 0
      %p81 = por %p79, %p80
      %p82 = scmp.ne.s32.totalorder %s71, %s74
      %p83 = scmp.eq.s32.totalorder %s19, 3
      %p84 = por %p82, %p83
      %p85 = scmp.ne.s32.totalorder %s74, %s75
      %p86 = scmp.eq.s32.totalorder %s19, 0
      %p87 = por %p85, %p86
      %p88 = scmp.ne.s32.totalorder %s74, %s75
      %p89 = scmp.eq.s32.totalorder %s20, 3
      %p90 = por %p88, %p89
      %p92 = scmp.ne.s32.totalorder %s75, %s91
      %p93 = scmp.eq.s32.totalorder %s20, 0
      %p94 = por %p92, %p93
      %p95 = scmp.le.s32.totalorder 1, %s14
      %p96 = scmp.lt.s32.totalorder %s14, 5
      %p97 = pnand %p95, %p96
      %p98 = pneg %p97
      // Predicated region
      $region9: #{tpu_custom_call.1} parent=5 // pred_check
        _
      $region10: #{tpu_custom_call.1} parent=5 // pred_check_branch
        %100 = sbr.rel (%p97) target = $region12
      $region11: #{tpu_custom_call.1} parent=5 // pred_region
        %s101 = ssub.s32 %s14, 1
        // Predicated region
        $region13: #{tpu_custom_call.1} parent=11 // pred_check
          %p102 = pneg %p61
        $region14: #{tpu_custom_call.1} parent=11 // pred_check_branch
          %104 = sbr.rel (%p102) target = $region16
        $region15: #{tpu_custom_call.1} parent=11 // pred_region
          _
        $region16: #{tpu_custom_call.1} parent=11 // pred_fallthru
          _
      $region12: #{tpu_custom_call.1} parent=5 // pred_fallthru
        _
      %p105 = scmp.lt.s32.totalorder %s14, 4
      // Predicated region
      $region17: #{tpu_custom_call.1} parent=5 // pred_check
        %p106 = pneg %p105
      $region18: #{tpu_custom_call.1} parent=5 // pred_check_branch
        %108 = sbr.rel (%p106) target = $region20
      $region19: #{tpu_custom_call.1} parent=5 // pred_region
        // Predicated region
        $region21: #{tpu_custom_call.1} parent=19 // pred_check
          %p109 = pneg %p34
        $region22: #{tpu_custom_call.1} parent=19 // pred_check_branch
          %111 = sbr.rel (%p109) target = $region24
        $region23: #{tpu_custom_call.1} parent=19 // pred_region
          %s112 = sand.u32 %s24, 1
          %s113 = scalar_lea.sflag [#allocation3], %s112
          %s114 = sand.u32 %s24, 1
          %s115 = smul.addr %s114, 64
          %s116 = scalar_lea.vmem [#allocation2], %s115
          %s117 = smul.u32 4, %s14
          %s119 = ssub.s32 1024, 1024
          %120 = vsyncadd %s113, %s119
          %s121 = smul.addr %s117, 2
          %s122 = smul.addr %s121, 128
          %s123 = scalar_lea.hbm %s0, %s122
          %s124 = sshll.u32 %s116, 4
          %s125 = int_to_ptr.vmem [resolvable:$true] %s124
          %130 = dma.hbm_to_vmem [thread:$0]  %s123, 1024, %s125, %s113, 256, 256, 16
        $region24: #{tpu_custom_call.1} parent=19 // pred_fallthru
          _
      $region20: #{tpu_custom_call.1} parent=5 // pred_fallthru
        _
      %p131 = scmp.le.s32.totalorder 1, %s14
      %p132 = scmp.lt.s32.totalorder %s14, 5
      %p133 = pnand %p131, %p132
      %p134 = pneg %p133
      // Predicated region
      $region25: #{tpu_custom_call.1} parent=5 // pred_check
        _
      $region26: #{tpu_custom_call.1} parent=5 // pred_check_branch
        %136 = sbr.rel (%p133) target = $region28
      $region27: #{tpu_custom_call.1} parent=5 // pred_region
        %s137 = ssub.s32 %s14, 1
        %s138 = sand.u32 %s27, 1
        %s139 = scalar_lea.sflag [#allocation3], %s138
        %s140 = sand.u32 %s27, 1
        %s141 = smul.addr %s140, 64
        %s142 = scalar_lea.vmem [#allocation2], %s141
        // Predicated region
        $region29: #{tpu_custom_call.1} parent=27 // pred_check
          %p143 = pneg %p40
        $region30: #{tpu_custom_call.1} parent=27 // pred_check_branch
          %145 = sbr.rel (%p143) target = $region32
        $region31: #{tpu_custom_call.1} parent=27 // pred_region
          %146 = dma.done %s139, 1024
        $region32: #{tpu_custom_call.1} parent=27 // pred_fallthru
          _
        %s147 = sand.u32 %s27, 1
        %s148 = scalar_lea.sflag [#allocation3], %s147
        %s149 = sand.u32 %s27, 1
        %s150 = smul.addr %s149, 64
        %s151 = scalar_lea.vmem [#allocation2], %s150
        %p152 = pneg %p40
        %p153 = pneg %p37
        %p154 = pneg %p61
        %p155 = pneg %p58
        %p156 = pneg %p87
        %p157 = pneg %p84
        %s158 = sand.u32 %s74, 1
        %s159 = scalar_lea.sflag [#allocation4], %s158
        %s160 = sand.u32 %s74, 1
        %s161 = smul.addr %s160, 64
        %s162 = scalar_lea.vmem [#allocation5], %s161
        %s163 = smul.u32 4, %s19
        %s164 = smul.u32 4, %s19
        %v165 = vld [vmem:[%s142] sm:$0xff]
        %v166 = vld [vmem:[%s142 + $0x8] sm:$0xff]
        %v167 = vld [vmem:[%s142 + $0x10] sm:$0xff]
        %v168 = vld [vmem:[%s142 + $0x18] sm:$0xff]
        %v169 = vld [vmem:[%s142 + $0x20] sm:$0xff]
        %v170 = vld [vmem:[%s142 + $0x28] sm:$0xff]
        %v171 = vld [vmem:[%s142 + $0x30] sm:$0xff]
        %v172 = vld [vmem:[%s142 + $0x38] sm:$0xff]
        %v173 = vld [vmem:[%s1] sm:$0x3]
        %v175 = vlaneseq
        %v176 = vshrl.u32 %v175, 7
        %v177 = vsub.s32 0, %v176
        %v178 = vrot.slane %v173, %v177
        %v179 = vlaneseq
        %v180 = vshrl.u32 %v179, 7
        %v181 = vsub.s32 1, %v180
        %v182 = vrot.slane %v173, %v181
        %v185 = vmul.f32 %v165, %v178
        %v186 = vmul.f32 %v166, %v182
        %v187 = vmul.f32 %v167, %v178
        %v188 = vmul.f32 %v168, %v182
        %v189 = vmul.f32 %v169, %v178
        %v190 = vmul.f32 %v170, %v182
        %v191 = vmul.f32 %v171, %v178
        %v192 = vmul.f32 %v172, %v182
        %193 = vst [vmem:[%s162] sm:$0xff] %v185
        %194 = vst [vmem:[%s162 + $0x8] sm:$0xff] %v186
        %195 = vst [vmem:[%s162 + $0x10] sm:$0xff] %v187
        %196 = vst [vmem:[%s162 + $0x18] sm:$0xff] %v188
        %197 = vst [vmem:[%s162 + $0x20] sm:$0xff] %v189
        %198 = vst [vmem:[%s162 + $0x28] sm:$0xff] %v190
        %199 = vst [vmem:[%s162 + $0x30] sm:$0xff] %v191
        %200 = vst [vmem:[%s162 + $0x38] sm:$0xff] %v192
        %s201 = sand.u32 %s74, 1
        %s202 = scalar_lea.sflag [#allocation4], %s201
        %s203 = sand.u32 %s74, 1
        %s204 = smul.addr %s203, 64
        %s205 = scalar_lea.vmem [#allocation5], %s204
        // Predicated region
        $region33: #{tpu_custom_call.1} parent=27 // pred_check
          %p206 = pneg %p84
        $region34: #{tpu_custom_call.1} parent=27 // pred_check_branch
          %208 = sbr.rel (%p206) target = $region36
        $region35: #{tpu_custom_call.1} parent=27 // pred_region
          %s209 = smul.u32 4, %s19
          %s211 = ssub.s32 1024, 1024
          %212 = vsyncadd %s202, %s211
          %s213 = smul.addr %s209, 2
          %s214 = smul.addr %s213, 128
          %s215 = scalar_lea.hbm %s2, %s214
          %s216 = sshll.u32 %s205, 4
          %s217 = int_to_ptr.vmem [resolvable:$true] %s216
          %222 = dma.vmem_to_hbm [thread:$0]  %s217, 1024, %s215, %s202, 256, 256, 16
        $region36: #{tpu_custom_call.1} parent=27 // pred_fallthru
          _
      $region28: #{tpu_custom_call.1} parent=5 // pred_fallthru
        _
      %p223 = scmp.le.s32.totalorder 2, %s14
      // Predicated region
      $region37: #{tpu_custom_call.1} parent=5 // pred_check
        %p224 = pneg %p223
      $region38: #{tpu_custom_call.1} parent=5 // pred_check_branch
        %226 = sbr.rel (%p224) target = $region40
      $region39: #{tpu_custom_call.1} parent=5 // pred_region
        %s227 = ssub.s32 %s14, 2
        // Predicated region
        $region41: #{tpu_custom_call.1} parent=39 // pred_check
          %p228 = pneg %p90
        $region42: #{tpu_custom_call.1} parent=39 // pred_check_branch
          %230 = sbr.rel (%p228) target = $region44
        $region43: #{tpu_custom_call.1} parent=39 // pred_region
          %s231 = sand.u32 %s75, 1
          %s232 = scalar_lea.sflag [#allocation4], %s231
          %s233 = sand.u32 %s75, 1
          %s234 = smul.addr %s233, 64
          %s235 = scalar_lea.vmem [#allocation5], %s234
          %236 = dma.done %s232, 1024
        $region44: #{tpu_custom_call.1} parent=39 // pred_fallthru
          _
      $region40: #{tpu_custom_call.1} parent=5 // pred_fallthru
        _
    $region6: #{tpu_custom_call.1} parent=1 // loop_footer
      %s18 = sadd.s32 1, %s14
    $region7: #{tpu_custom_call.1} parent=1 // loop_footer_branch
      %13 = sbr.rel target = $region3
    $region8: #{tpu_custom_call.1} parent=1 // loop_exit
      _
    %237 = vsyncpa [#allocation3], 1
    %s238 = scalar_lea.sflag [#allocation3], 1
    %239 = vsyncpa %s238, 1
    %240 = vsyncpa [#allocation4], 1
    %s241 = scalar_lea.sflag [#allocation4], 1
    %242 = vsyncpa %s241, 1

</llo_original>
